<compile_context>
chip_gen: v7x
topology: tpu7x:2x2x1
jax: 0.10.0
libtpu: 0.0.40
codegen_flags: <defaults>
</compile_context>

<pallas_src>
import jax
import jax.numpy as jnp
from jax import lax
from jax.experimental import pallas as pl
from jax.experimental.pallas import tpu as pltpu

_LANE = 128


def _round_up(v, m):
    return (v + m - 1) // m * m


def _choose_tile_n(n, *, hidden, nvecs, k_out, batch,
                   vmem_budget_bytes=24 << 20, tn_cap=16 * 1024, min_grid=8):
    """Eval-point (lane-axis) tile size TN and padded N (multiple of TN).

    TN is derived from an explicit per-tile VMEM budget (so per-grid-step
    overhead is amortised), then balanced so the grid keeps >= min_grid steps
    (megacore / pipeline depth) whenever N is large enough.
    """
    sub_v = max(8, nvecs)
    sub_k = max(8, k_out)
    # conservative bytes held per eval point while a tile is in flight
    per_point = (
        2 * 8 * 4            # x^T tile (3 -> 8 sublanes, f32), double-buffered
        + 2 * sub_k * 4      # output tile, double-buffered
        + 2 * hidden * 4     # z1 / z2 f32 activations
        + 2 * hidden * 2     # a1 / a2 bf16 activations
        + 6 * sub_v * 4      # f_dot / f_dist / difference temporaries (f32)
        + 2 * sub_v * 2      # bf16 feature rows fed to the MXU
        + 6 * 8 * 4          # |x|^2 / rsqrt style [1, TN] rows (vreg padded)
    )
    budget_tn = max(_LANE, (vmem_budget_bytes // per_point) // _LANE * _LANE)
    budget_tn = min(budget_tn, tn_cap)

    n_pad = _round_up(max(n, _LANE), _LANE)
    steps = max(-(-n_pad // budget_tn),            # enough steps for the budget
                -(-min_grid // max(batch, 1)))     # enough steps to feed 2 TCs
    tn = _round_up(-(-n_pad // steps), _LANE)
    tn = min(tn, n_pad)
    n_pad = _round_up(n_pad, tn)
    return tn, n_pad


def _decoder_kernel(xT_ref, hn_ref, hr_ref, c1_ref,
                    w1dT_ref, w1eT_ref, w2T_ref, b2_ref, w3T_ref, b3_ref,
                    o_ref):
    """Grid step (b, n_tile): transposed feature build + transposed MLP.

    Rows = feature / hidden-unit index, lanes = eval point, so every MXU
    output and the HBM store are lane-dense.
    """
    xT = xT_ref[0]                 # [3, TN]  positions^T for this tile
    hn = hn_ref[0]                 # [V, 3]   h / (|h| + 1e-5)  (wrapper-side)
    hr = hr_ref[0]                 # [V, 3]   raw latent vectors
    c1 = c1_ref[0]                 # [H, 1]   b1 + W1a^T|h| + W1d^T s (per batch)

    x0, x1, x2 = xT[0:1], xT[1:2], xT[2:3]                          # [1, TN]

    # 1/(|x|+1e-5) ~= rsqrt(|x|^2 + 1e-10): one EUP op (leaves the EUP slot
    # free for the f_dist sqrt); |x|^2 is 3 VPU FMAs.
    inv_x = lax.rsqrt(x0 * x0 + x1 * x1 + x2 * x2 + 1e-10)          # [1, TN]

    # feat2: (x/|x|).(h/|h|) -- contraction dim is 3, so VPU FMAs beat the MXU.
    f_dot = (hn[:, 0:1] * x0 + hn[:, 1:2] * x1 + hn[:, 2:3] * x2) * inv_x  # [V,TN]

    # feat3: |x - h| (exact difference form; no cancellation)
    d0 = x0 - hr[:, 0:1]
    d1 = x1 - hr[:, 1:2]
    d2 = x2 - hr[:, 2:3]
    f_dist = jnp.sqrt(d0 * d0 + d1 * d1 + d2 * d2)                  # [V, TN]

    bf16 = jnp.bfloat16
    # ---- MLP, transposed: z^T = W^T a^T + b ----
    # Layer 1 as two tiny MXU pushes (contraction V each); the row-constant
    # feat1/feat4/bias terms were folded into c1 in the wrapper.  H/V are NOT
    # padded up to MXU tiles -- the MXU is not the binding slot here.
    z1 = (jnp.dot(w1dT_ref[...], f_dot.astype(bf16),
                  preferred_element_type=jnp.float32)
          + jnp.dot(w1eT_ref[...], f_dist.astype(bf16),
                    preferred_element_type=jnp.float32)
          + c1)                                                     # [H, TN]
    a1 = jnp.maximum(z1, 0.01 * z1).astype(bf16)                    # LeakyReLU

    z2 = jnp.dot(w2T_ref[...], a1,
                 preferred_element_type=jnp.float32) + b2_ref[...]  # [H, TN]
    a2 = jnp.maximum(z2, 0.01 * z2).astype(bf16)

    # TODO(perf): for K == 1 a VPU broadcast-mul + sublane reduce could replace
    # this MXU push; kept on the MXU for generality in K.
    out = jnp.dot(w3T_ref[...], a2,
                  preferred_element_type=jnp.float32) + b3_ref[...]  # [K, TN]
    o_ref[0] = out.astype(o_ref.dtype)                              # lane-dense store


def network_decoder_forward(x, h, s, params, *, x_transposed=False,
                            vmem_budget_bytes=24 << 20):
    """Pallas wrapper.

    x: [B,N,3] positions (or [B,3,N] if x_transposed=True), h: [B,V,3] latent
    vectors, s: [B,S] latent scalars -> [B,N,k_out].
    """
    if x_transposed:
        B, _, N = x.shape
        xT = x
    else:
        B, N, _ = x.shape
        # NOTE(perf): this materialises a [B,3,N] copy of x (one extra HBM
        # read+write pass over the largest input).  Producers that can emit x
        # in [B,3,N] layout should pass x_transposed=True and skip it.
        xT = jnp.swapaxes(x, 1, 2)

    V = h.shape[1]
    w1, b1, w2, b2, w3, b3 = (params[k] for k in ("w1", "b1", "w2", "b2", "w3", "b3"))
    H = w1.shape[1]
    K = w3.shape[1]

    TN, n_pad = _choose_tile_n(N, hidden=H, nvecs=V, k_out=K, batch=B,
                               vmem_budget_bytes=vmem_budget_bytes)
    if n_pad != N:
        # pad eval points to a multiple of TN (tail sliced off below); keeps
        # stores lane-dense and avoids one giant whole-N tile blowing VMEM.
        xT = jnp.pad(xT, ((0, 0), (0, 0), (0, n_pad - N)))

    f32, bf16 = jnp.float32, jnp.bfloat16

    # ---- wrapper-side glue: per-batch / per-weight only (tiny, plain JAX) ----
    h_norm = jnp.linalg.norm(h, axis=-1, keepdims=True)              # [B,V,1]
    h_unit = (h / (h_norm + 1e-5)).astype(f32)                       # [B,V,3]
    h_raw = h.astype(f32)
    # fold the row-constant layer-1 terms (feat1 = |h|, feat4 = s) + bias into
    # one per-batch column: c1 = b1 + |h| @ W1[:V] + s @ W1[3V:]
    c1 = b1[None, :] + h_norm[..., 0] @ w1[:V] + s @ w1[3 * V:]      # [B, H]
    c1 = c1[:, :, None].astype(f32)                                  # [B, H, 1]

    w1dT = jnp.transpose(w1[V:2 * V]).astype(bf16)                   # [H, V]  x.h rows
    w1eT = jnp.transpose(w1[2 * V:3 * V]).astype(bf16)               # [H, V]  |x-h| rows
    w2T = jnp.transpose(w2).astype(bf16)                             # [H, H]
    w3T = jnp.transpose(w3).astype(bf16)                             # [K, H]
    b2c = b2.reshape(H, 1).astype(f32)
    b3c = b3.reshape(K, 1).astype(f32)

    # Raise the scoped VMEM limit so big tiles compile on v5e (16 MiB default);
    # capped at 48 MiB to stay inside v7x's 64 MiB physical VMEM with headroom.
    vmem_limit = int(min(48 << 20, max(32 << 20, 2 * vmem_budget_bytes)))

    grid_spec = pltpu.PrefetchScalarGridSpec(
        num_scalar_prefetch=0,
        grid=(B, n_pad // TN),
        in_specs=[
            # NOTE(perf): if the x^T DMA is still exposed after enlarging TN,
            # deepen this spec with pipeline_mode=pl.Buffered(3) rather than
            # shrinking the tile.
            pl.BlockSpec((1, 3, TN), lambda b, n: (b, 0, n)),        # x^T tile
            pl.BlockSpec((1, V, 3), lambda b, n: (b, 0, 0)),         # h / |h|
            pl.BlockSpec((1, V, 3), lambda b, n: (b, 0, 0)),         # h (raw)
            pl.BlockSpec((1, H, 1), lambda b, n: (b, 0, 0)),         # folded const col
            # NOTE(perf): for large H on v7x, single-buffer these constant
            # weight blocks (pipeline_mode=pl.Buffered(1)); negligible at H=32.
            pl.BlockSpec((H, V), lambda b, n: (0, 0)),               # W1[V:2V]^T
            pl.BlockSpec((H, V), lambda b, n: (0, 0)),               # W1[2V:3V]^T
            pl.BlockSpec((H, H), lambda b, n: (0, 0)),               # W2^T
            pl.BlockSpec((H, 1), lambda b, n: (0, 0)),               # b2
            pl.BlockSpec((K, H), lambda b, n: (0, 0)),               # W3^T
            pl.BlockSpec((K, 1), lambda b, n: (0, 0)),               # b3
        ],
        out_specs=pl.BlockSpec((1, K, TN), lambda b, n: (b, 0, n)),
    )

    out_t = pl.pallas_call(
        _decoder_kernel,
        out_shape=jax.ShapeDtypeStruct((B, K, n_pad), x.dtype),
        grid_spec=grid_spec,
        compiler_params=pltpu.CompilerParams(
            dimension_semantics=("parallel", "parallel"),
            vmem_limit_bytes=vmem_limit),
    )(xT, h_unit, h_raw, c1, w1dT, w1eT, w2T, b2c, w3T, b3c)

    # K is typically 1, so this transpose is a free reshape; for K>1 consumers
    # that can take [B,K,N] directly should use out_t[:, :, :N] instead.
    return jnp.swapaxes(out_t[:, :, :N], 1, 2)                       # [B, N, K]


def init_params(key, Nvecs, Nscals, hidden, k_out):
    """Deterministic synthetic parameters for the decoder MLP."""
    F = 3 * Nvecs + Nscals
    k1, k2, k3, k4, k5, k6 = jax.random.split(key, 6)
    return {
        "w1": jax.random.normal(k1, (F, hidden), jnp.float32) / jnp.sqrt(F),
        "b1": 0.05 * jax.random.normal(k2, (hidden,), jnp.float32),
        "w2": jax.random.normal(k3, (hidden, hidden), jnp.float32) / jnp.sqrt(hidden),
        "b2": 0.05 * jax.random.normal(k4, (hidden,), jnp.float32),
        "w3": jax.random.normal(k5, (hidden, k_out), jnp.float32) / jnp.sqrt(hidden),
        "b3": 0.05 * jax.random.normal(k6, (k_out,), jnp.float32),
    }


def decoder_reference(x, h, s, params):
    """Pure-JAX (f32) mirror of the PyTorch forward (create_scalars + MLP)."""
    B, N, _ = x.shape
    V = h.shape[1]
    S = s.shape[1]
    x_norm = jnp.linalg.norm(x, axis=-1, keepdims=True) + 1e-5          # [B,N,1]
    h_norm = jnp.linalg.norm(h, axis=-1, keepdims=True)                 # [B,V,1]
    feat1 = jnp.broadcast_to(h_norm[:, None, :, 0], (B, N, V))          # |h|
    feat2 = jnp.einsum("bvd,bld->bvl", x / x_norm, h / (h_norm + 1e-5))  # x.h
    feat3 = jnp.linalg.norm(x[:, :, None, :] - h[:, None, :, :], axis=-1)
    feat4 = jnp.broadcast_to(s[:, None, :], (B, N, S))
    scalars = jnp.concatenate([feat1, feat2, feat3, feat4], axis=-1)

    def lrelu(v):
        return jnp.where(v > 0, v, 0.01 * v)

    z1 = lrelu(scalars @ params["w1"] + params["b1"])
    z2 = lrelu(z1 @ params["w2"] + params["b2"])
    return z2 @ params["w3"] + params["b3"]


if __name__ == "__main__":
    B, N_TNG, Nvecs, Nscals, HIDDEN, K_OUT = 2, 16, 4, 4, 32, 1

    key = jax.random.PRNGKey(0)
    kx, kh, ks, kp = jax.random.split(key, 4)
    x = 0.5 * jax.random.normal(kx, (B, N_TNG, 3), jnp.float32)   # positions
    h = 0.5 * jax.random.normal(kh, (B, Nvecs, 3), jnp.float32)   # latent vectors
    s = jax.random.normal(ks, (B, Nscals), jnp.float32)           # latent scalars
    params = init_params(kp, Nvecs, Nscals, HIDDEN, K_OUT)

    # host-side mirror of the module's `assert x_norm.max() < 3.5`
    assert float(jnp.max(jnp.linalg.norm(x, axis=-1))) + 1e-5 < 3.5

    out = network_decoder_forward(x, h, s, params)
    out = jax.block_until_ready(out)

    ref = decoder_reference(x, h, s, params)
    assert out.shape == (B, N_TNG, K_OUT)
    max_err = float(jnp.max(jnp.abs(out - ref)))
    # bf16 matmul operands -> compare at a bf16-level tolerance
    assert jnp.allclose(out, ref, rtol=2e-2, atol=2e-2), max_err

    print("KERNEL_OK")
</pallas_src>

<mosaic_0001>
module attributes {stable_mosaic.version = 11 : i64} {
  func.func @_decoder_kernel(%arg0: i32, %arg1: i32, %arg2: memref<1x3x128xf32, #tpu.memory_space<vmem>>, %arg3: memref<1x4x3xf32, #tpu.memory_space<vmem>>, %arg4: memref<1x4x3xf32, #tpu.memory_space<vmem>>, %arg5: memref<1x32x1xf32, #tpu.memory_space<vmem>>, %arg6: memref<32x4xbf16, #tpu.memory_space<vmem>>, %arg7: memref<32x4xbf16, #tpu.memory_space<vmem>>, %arg8: memref<32x32xbf16, #tpu.memory_space<vmem>>, %arg9: memref<32x1xf32, #tpu.memory_space<vmem>>, %arg10: memref<1x32xbf16, #tpu.memory_space<vmem>>, %arg11: memref<1x1xf32, #tpu.memory_space<vmem>>, %arg12: memref<1x1x128xf32, #tpu.memory_space<vmem>>) attributes {dimension_semantics = [#tpu.dimension_semantics<parallel>, #tpu.dimension_semantics<parallel>], iteration_bounds = array<i64: 2, 1>, scalar_prefetch = 0 : i64, scratch_operands = 0 : i64, tpu.core_type = #tpu.core_type<tc>, window_params = [{transform_indices = @transform_0, window_bounds = array<i64: 1, 3, 128>}, {transform_indices = @transform_1, window_bounds = array<i64: 1, 4, 3>}, {transform_indices = @transform_2, window_bounds = array<i64: 1, 4, 3>}, {transform_indices = @transform_3, window_bounds = array<i64: 1, 32, 1>}, {pipeline_mode = #tpu.pipeline_mode<synchronous>, transform_indices = @transform_4, window_bounds = array<i64: 32, 4>}, {pipeline_mode = #tpu.pipeline_mode<synchronous>, transform_indices = @transform_5, window_bounds = array<i64: 32, 4>}, {pipeline_mode = #tpu.pipeline_mode<synchronous>, transform_indices = @transform_6, window_bounds = array<i64: 32, 32>}, {pipeline_mode = #tpu.pipeline_mode<synchronous>, transform_indices = @transform_7, window_bounds = array<i64: 32, 1>}, {pipeline_mode = #tpu.pipeline_mode<synchronous>, transform_indices = @transform_8, window_bounds = array<i64: 1, 32>}, {pipeline_mode = #tpu.pipeline_mode<synchronous>, transform_indices = @transform_9, window_bounds = array<i64: 1, 1>}, {transform_indices = @transform_10, window_bounds = array<i64: 1, 1, 128>}]} {
    %c0 = arith.constant 0 : index
    %c0_0 = arith.constant 0 : index
    %c0_1 = arith.constant 0 : index
    %0 = vector.load %arg2[%c0, %c0_0, %c0_1] : memref<1x3x128xf32, #tpu.memory_space<vmem>>, vector<1x3x128xf32>
    %1 = vector.shape_cast %0 : vector<1x3x128xf32> to vector<3x128xf32>
    %c0_2 = arith.constant 0 : index
    %c0_3 = arith.constant 0 : index
    %c0_4 = arith.constant 0 : index
    %2 = vector.load %arg3[%c0_2, %c0_3, %c0_4] : memref<1x4x3xf32, #tpu.memory_space<vmem>>, vector<1x4x3xf32>
    %3 = vector.shape_cast %2 : vector<1x4x3xf32> to vector<4x3xf32>
    %c0_5 = arith.constant 0 : index
    %c0_6 = arith.constant 0 : index
    %c0_7 = arith.constant 0 : index
    %4 = vector.load %arg4[%c0_5, %c0_6, %c0_7] : memref<1x4x3xf32, #tpu.memory_space<vmem>>, vector<1x4x3xf32>
    %5 = vector.shape_cast %4 : vector<1x4x3xf32> to vector<4x3xf32>
    %c0_8 = arith.constant 0 : index
    %c0_9 = arith.constant 0 : index
    %c0_10 = arith.constant 0 : index
    %6 = vector.load %arg5[%c0_8, %c0_9, %c0_10] : memref<1x32x1xf32, #tpu.memory_space<vmem>>, vector<1x32x1xf32>
    %7 = vector.shape_cast %6 : vector<1x32x1xf32> to vector<32x1xf32>
    %8 = vector.extract_strided_slice %1 {offsets = [0, 0], sizes = [1, 128], strides = [1, 1]} : vector<3x128xf32> to vector<1x128xf32>
    %9 = vector.extract_strided_slice %1 {offsets = [1, 0], sizes = [1, 128], strides = [1, 1]} : vector<3x128xf32> to vector<1x128xf32>
    %10 = vector.extract_strided_slice %1 {offsets = [2, 0], sizes = [1, 128], strides = [1, 1]} : vector<3x128xf32> to vector<1x128xf32>
    %11 = arith.mulf %8, %8 : vector<1x128xf32>
    %12 = arith.mulf %9, %9 : vector<1x128xf32>
    %13 = arith.addf %11, %12 : vector<1x128xf32>
    %14 = arith.mulf %10, %10 : vector<1x128xf32>
    %15 = arith.addf %13, %14 : vector<1x128xf32>
    %cst = arith.constant 1.000000e-10 : f32
    %16 = vector.broadcast %cst : f32 to vector<1x128xf32>
    %17 = arith.addf %15, %16 : vector<1x128xf32>
    %18 = math.rsqrt %17 : vector<1x128xf32>
    %19 = vector.extract_strided_slice %3 {offsets = [0, 0], sizes = [4, 1], strides = [1, 1]} : vector<4x3xf32> to vector<4x1xf32>
    %20 = vector.broadcast %19 : vector<4x1xf32> to vector<4x128xf32>
    %21 = vector.broadcast %8 : vector<1x128xf32> to vector<4x128xf32>
    %22 = arith.mulf %20, %21 : vector<4x128xf32>
    %23 = vector.extract_strided_slice %3 {offsets = [0, 1], sizes = [4, 1], strides = [1, 1]} : vector<4x3xf32> to vector<4x1xf32>
    %24 = vector.broadcast %23 : vector<4x1xf32> to vector<4x128xf32>
    %25 = vector.broadcast %9 : vector<1x128xf32> to vector<4x128xf32>
    %26 = arith.mulf %24, %25 : vector<4x128xf32>
    %27 = arith.addf %22, %26 : vector<4x128xf32>
    %28 = vector.extract_strided_slice %3 {offsets = [0, 2], sizes = [4, 1], strides = [1, 1]} : vector<4x3xf32> to vector<4x1xf32>
    %29 = vector.broadcast %28 : vector<4x1xf32> to vector<4x128xf32>
    %30 = vector.broadcast %10 : vector<1x128xf32> to vector<4x128xf32>
    %31 = arith.mulf %29, %30 : vector<4x128xf32>
    %32 = arith.addf %27, %31 : vector<4x128xf32>
    %33 = vector.broadcast %18 : vector<1x128xf32> to vector<4x128xf32>
    %34 = arith.mulf %32, %33 : vector<4x128xf32>
    %35 = vector.extract_strided_slice %5 {offsets = [0, 0], sizes = [4, 1], strides = [1, 1]} : vector<4x3xf32> to vector<4x1xf32>
    %36 = vector.broadcast %8 : vector<1x128xf32> to vector<4x128xf32>
    %37 = vector.broadcast %35 : vector<4x1xf32> to vector<4x128xf32>
    %38 = arith.subf %36, %37 : vector<4x128xf32>
    %39 = vector.extract_strided_slice %5 {offsets = [0, 1], sizes = [4, 1], strides = [1, 1]} : vector<4x3xf32> to vector<4x1xf32>
    %40 = vector.broadcast %9 : vector<1x128xf32> to vector<4x128xf32>
    %41 = vector.broadcast %39 : vector<4x1xf32> to vector<4x128xf32>
    %42 = arith.subf %40, %41 : vector<4x128xf32>
    %43 = vector.extract_strided_slice %5 {offsets = [0, 2], sizes = [4, 1], strides = [1, 1]} : vector<4x3xf32> to vector<4x1xf32>
    %44 = vector.broadcast %10 : vector<1x128xf32> to vector<4x128xf32>
    %45 = vector.broadcast %43 : vector<4x1xf32> to vector<4x128xf32>
    %46 = arith.subf %44, %45 : vector<4x128xf32>
    %47 = arith.mulf %38, %38 : vector<4x128xf32>
    %48 = arith.mulf %42, %42 : vector<4x128xf32>
    %49 = arith.addf %47, %48 : vector<4x128xf32>
    %50 = arith.mulf %46, %46 : vector<4x128xf32>
    %51 = arith.addf %49, %50 : vector<4x128xf32>
    %52 = math.sqrt %51 : vector<4x128xf32>
    %c0_11 = arith.constant 0 : index
    %c0_12 = arith.constant 0 : index
    %53 = vector.load %arg6[%c0_11, %c0_12] : memref<32x4xbf16, #tpu.memory_space<vmem>>, vector<32x4xbf16>
    %54 = arith.truncf %34 : vector<4x128xf32> to vector<4x128xbf16>
    %cst_13 = arith.constant dense<0.000000e+00> : vector<32x128xf32>
    %55 = tpu.matmul %53, %54, %cst_13 {dimension_numbers = #tpu.dot_dimension_numbers<[1], [0], [0], [1], [0, 0, 1, 1], [], []>} : vector<32x4xbf16>, vector<4x128xbf16>, vector<32x128xf32> -> vector<32x128xf32>
    %c0_14 = arith.constant 0 : index
    %c0_15 = arith.constant 0 : index
    %56 = vector.load %arg7[%c0_14, %c0_15] : memref<32x4xbf16, #tpu.memory_space<vmem>>, vector<32x4xbf16>
    %57 = arith.truncf %52 : vector<4x128xf32> to vector<4x128xbf16>
    %cst_16 = arith.constant dense<0.000000e+00> : vector<32x128xf32>
    %58 = tpu.matmul %56, %57, %cst_16 {dimension_numbers = #tpu.dot_dimension_numbers<[1], [0], [0], [1], [0, 0, 1, 1], [], []>} : vector<32x4xbf16>, vector<4x128xbf16>, vector<32x128xf32> -> vector<32x128xf32>
    %59 = arith.addf %55, %58 : vector<32x128xf32>
    %60 = vector.broadcast %7 : vector<32x1xf32> to vector<32x128xf32>
    %61 = arith.addf %59, %60 : vector<32x128xf32>
    %cst_17 = arith.constant 0.00999999977 : f32
    %62 = vector.broadcast %cst_17 : f32 to vector<32x128xf32>
    %63 = arith.mulf %62, %61 : vector<32x128xf32>
    %64 = arith.maximumf %61, %63 : vector<32x128xf32>
    %65 = arith.truncf %64 : vector<32x128xf32> to vector<32x128xbf16>
    %c0_18 = arith.constant 0 : index
    %c0_19 = arith.constant 0 : index
    %66 = vector.load %arg8[%c0_18, %c0_19] : memref<32x32xbf16, #tpu.memory_space<vmem>>, vector<32x32xbf16>
    %cst_20 = arith.constant dense<0.000000e+00> : vector<32x128xf32>
    %67 = tpu.matmul %66, %65, %cst_20 {dimension_numbers = #tpu.dot_dimension_numbers<[1], [0], [0], [1], [0, 0, 1, 1], [], []>} : vector<32x32xbf16>, vector<32x128xbf16>, vector<32x128xf32> -> vector<32x128xf32>
    %c0_21 = arith.constant 0 : index
    %c0_22 = arith.constant 0 : index
    %68 = vector.load %arg9[%c0_21, %c0_22] : memref<32x1xf32, #tpu.memory_space<vmem>>, vector<32x1xf32>
    %69 = vector.broadcast %68 : vector<32x1xf32> to vector<32x128xf32>
    %70 = arith.addf %67, %69 : vector<32x128xf32>
    %cst_23 = arith.constant 0.00999999977 : f32
    %71 = vector.broadcast %cst_23 : f32 to vector<32x128xf32>
    %72 = arith.mulf %71, %70 : vector<32x128xf32>
    %73 = arith.maximumf %70, %72 : vector<32x128xf32>
    %74 = arith.truncf %73 : vector<32x128xf32> to vector<32x128xbf16>
    %c0_24 = arith.constant 0 : index
    %c0_25 = arith.constant 0 : index
    %75 = vector.load %arg10[%c0_24, %c0_25] : memref<1x32xbf16, #tpu.memory_space<vmem>>, vector<1x32xbf16>
    %cst_26 = arith.constant dense<0.000000e+00> : vector<1x128xf32>
    %76 = tpu.matmul %75, %74, %cst_26 {dimension_numbers = #tpu.dot_dimension_numbers<[1], [0], [0], [1], [0, 0, 1, 1], [], []>} : vector<1x32xbf16>, vector<32x128xbf16>, vector<1x128xf32> -> vector<1x128xf32>
    %c0_27 = arith.constant 0 : index
    %c0_28 = arith.constant 0 : index
    %77 = vector.load %arg11[%c0_27, %c0_28] : memref<1x1xf32, #tpu.memory_space<vmem>>, vector<1x1xf32>
    %78 = vector.broadcast %77 : vector<1x1xf32> to vector<1x128xf32>
    %79 = arith.addf %76, %78 : vector<1x128xf32>
    %c0_29 = arith.constant 0 : index
    %c0_30 = arith.constant 0 : index
    %c0_31 = arith.constant 0 : index
    %80 = vector.load %arg12[%c0_29, %c0_30, %c0_31] : memref<1x1x128xf32, #tpu.memory_space<vmem>>, vector<1x1x128xf32>
    %81 = vector.shape_cast %80 : vector<1x1x128xf32> to vector<1x128xf32>
    %82 = vector.shape_cast %79 : vector<1x128xf32> to vector<1x1x128xf32>
    tpu.vector_store %arg12[%c0_29, %c0_30, %c0_31], %82 {strides = array<i32>} : memref<1x1x128xf32, #tpu.memory_space<vmem>>, vector<1x1x128xf32>,
    return
  }
  func.func @transform_0(%arg0: i32, %arg1: i32) -> (i32, i32, i32) {
    %c0_i32 = arith.constant 0 : i32
    %c0_i32_0 = arith.constant 0 : i32
    return %arg0, %c0_i32, %arg1 : i32, i32, i32
  }
  func.func @transform_1(%arg0: i32, %arg1: i32) -> (i32, i32, i32) {
    %c0_i32 = arith.constant 0 : i32
    %c0_i32_0 = arith.constant 0 : i32
    %c0_i32_1 = arith.constant 0 : i32
    return %arg0, %c0_i32, %c0_i32_0 : i32, i32, i32
  }
  func.func @transform_2(%arg0: i32, %arg1: i32) -> (i32, i32, i32) {
    %c0_i32 = arith.constant 0 : i32
    %c0_i32_0 = arith.constant 0 : i32
    %c0_i32_1 = arith.constant 0 : i32
    return %arg0, %c0_i32, %c0_i32_0 : i32, i32, i32
  }
  func.func @transform_3(%arg0: i32, %arg1: i32) -> (i32, i32, i32) {
    %c0_i32 = arith.constant 0 : i32
    %c0_i32_0 = arith.constant 0 : i32
    %c0_i32_1 = arith.constant 0 : i32
    return %arg0, %c0_i32, %c0_i32_0 : i32, i32, i32
  }
  func.func @transform_4(%arg0: i32, %arg1: i32) -> (i32, i32) {
    %c0_i32 = arith.constant 0 : i32
    %c0_i32_0 = arith.constant 0 : i32
    %c0_i32_1 = arith.constant 0 : i32
    return %c0_i32, %c0_i32_0 : i32, i32
  }
  func.func @transform_5(%arg0: i32, %arg1: i32) -> (i32, i32) {
    %c0_i32 = arith.constant 0 : i32
    %c0_i32_0 = arith.constant 0 : i32
    %c0_i32_1 = arith.constant 0 : i32
    return %c0_i32, %c0_i32_0 : i32, i32
  }
  func.func @transform_6(%arg0: i32, %arg1: i32) -> (i32, i32) {
    %c0_i32 = arith.constant 0 : i32
    %c0_i32_0 = arith.constant 0 : i32
    %c0_i32_1 = arith.constant 0 : i32
    return %c0_i32, %c0_i32_0 : i32, i32
  }
  func.func @transform_7(%arg0: i32, %arg1: i32) -> (i32, i32) {
    %c0_i32 = arith.constant 0 : i32
    %c0_i32_0 = arith.constant 0 : i32
    %c0_i32_1 = arith.constant 0 : i32
    return %c0_i32, %c0_i32_0 : i32, i32
  }
  func.func @transform_8(%arg0: i32, %arg1: i32) -> (i32, i32) {
    %c0_i32 = arith.constant 0 : i32
    %c0_i32_0 = arith.constant 0 : i32
    %c0_i32_1 = arith.constant 0 : i32
    return %c0_i32, %c0_i32_0 : i32, i32
  }
  func.func @transform_9(%arg0: i32, %arg1: i32) -> (i32, i32) {
    %c0_i32 = arith.constant 0 : i32
    %c0_i32_0 = arith.constant 0 : i32
    %c0_i32_1 = arith.constant 0 : i32
    return %c0_i32, %c0_i32_0 : i32, i32
  }
  func.func @transform_10(%arg0: i32, %arg1: i32) -> (i32, i32, i32) {
    %c0_i32 = arith.constant 0 : i32
    %c0_i32_0 = arith.constant 0 : i32
    return %arg0, %c0_i32, %arg1 : i32, i32, i32
  }
}

</mosaic_0001>

<llo_original>
// kernel: tpu_custom_call.1
$region0: #{tpu_custom_call.1}
  #allocation0 [shape = 'u32[]', space=smem, size = 0x4, offset = 0x4, fixed_abs, tag = 'smem constant byte address 0x4 - core index']
  #allocation1 [shape = 'u32[144,128]{1,0:T(1,128)}', space=vmem, size = 0x12000, scoped, tag = 'internal scratch']
  #allocation2 [shape = 'f32[1,1]{1,0:T(1,128)S(1)}', space=vmem, size = 0x200, scoped, tag = 'scoped memory for tpu_custom_call.1']
  %s0 = inlined_call_operand.vmem [shape: f32[2,3,128], index: 0, kind: input, shape index: {}]
  %s1 = inlined_call_operand.vmem [shape: f32[2,4,3], index: 1, kind: input, shape index: {}]
  %s2 = inlined_call_operand.vmem [shape: f32[2,4,3], index: 2, kind: input, shape index: {}]
  %s3 = inlined_call_operand.vmem [shape: f32[2,32,1], index: 3, kind: input, shape index: {}]
  %s4 = inlined_call_operand.vmem [shape: bf16[32,4], index: 4, kind: input, shape index: {}]
  %s5 = inlined_call_operand.vmem [shape: bf16[32,4], index: 5, kind: input, shape index: {}]
  %s6 = inlined_call_operand.vmem [shape: bf16[32,32], index: 6, kind: input, shape index: {}]
  %s7 = inlined_call_operand.vmem [shape: f32[32,1], index: 7, kind: input, shape index: {}]
  %s8 = inlined_call_operand.vmem [shape: bf16[1,32], index: 8, kind: input, shape index: {}]
  %s9 = inlined_call_operand.<no memory space> [shape: f32[1,1], index: 9, kind: input, shape index: {}]
  %s10 = inlined_call_operand.hbm [shape: f32[2,1,128], index: 10, kind: output, shape index: {}]
  %s11 = sld [smem:[#allocation0]]
  $region73: #{tpu_custom_call.1} parent=0
    _
  %s13 = ssub.s32 1, %s11
  %s14 = scalar_select 0, %s13, %s11
  %v15 = vstv %s9
  %16 = vst [vmem:[#allocation2] sm:$0x1] %v15
  $region1: #{tpu_custom_call.1} parent=0
    #allocation3 [shape = 'u8[1024]{0}', space=vmem, size = 0x400, scoped, tag = 'output window, operand 0']
    #allocation4 [shape = 's32[2]{0}', space=sflag, size = 0x8, scoped, tag = 'scoped memory for tpu_custom_call.1']
    %17 = vsyncpa [#allocation4], 0
    %s18 = scalar_lea.sflag [#allocation4], 1
    %19 = vsyncpa %s18, 0
    loop: start=0, step=1, limit=4
    $region2: #{tpu_custom_call.1} parent=1 // loop_pre_header
      _
    $region3: #{tpu_custom_call.1} parent=1 // loop_header
      %s21 = sphi 0, %s25
      %p22 = scmp.ge.s32.totalorder %s21, 4
      %s28 = sphi 0, %s40
      %s29 = sphi 0, %s36
      %s30 = sphi 0, %s28
      %s31 = sphi 0, %s29
      %s32 = sphi 0, %s30
      %s33 = sphi 0, %s31
      %s45 = sphi 0, %s47
      %s48 = sphi 0, %s45
      %s49 = sphi 0, %s48
      %s65 = sphi 0, %s49
      %s71 = sphi 0, %s73
      %s74 = sphi 0, %s71
      %s75 = sphi 0, %s74
      %s91 = sphi 0, %s75
      %s97 = sphi 0, %s99
      %s100 = sphi 0, %s97
      %s101 = sphi 0, %s100
      %s117 = sphi 0, %s101
      %s123 = sphi 0, %s125
      %s126 = sphi 0, %s123
      %s127 = sphi 0, %s126
      %s143 = sphi 0, %s127
      %s147 = sphi 0, %s147
      %s149 = sphi 0, %s147
      %s150 = sphi 0, %s149
      %s164 = sphi 0, %s150
      %s168 = sphi 0, %s168
      %s170 = sphi 0, %s168
      %s171 = sphi 0, %s170
      %s185 = sphi 0, %s171
      %s189 = sphi 0, %s189
      %s191 = sphi 0, %s189
      %s192 = sphi 0, %s191
      %s206 = sphi 0, %s192
      %s210 = sphi 0, %s210
      %s212 = sphi 0, %s210
      %s213 = sphi 0, %s212
      %s227 = sphi 0, %s213
      %s231 = sphi 0, %s231
      %s233 = sphi 0, %s231
      %s234 = sphi 0, %s233
      %s248 = sphi 0, %s234
      %s252 = sphi 0, %s252
      %s254 = sphi 0, %s252
      %s255 = sphi 0, %s254
      %s269 = sphi 0, %s255
      %s277 = sphi 0, %s279
      %s280 = sphi 0, %s277
      %s281 = sphi 0, %s280
      %s297 = sphi 0, %s281
    $region4: #{tpu_custom_call.1} parent=1 // loop_header_branch
      %24 = sbr.rel (%p22) target = $region8
    $region5: #{tpu_custom_call.1} parent=1 // loop_body
      %s26 = ssub.s32 %s21, 1
      %s27 = ssub.s32 %s21, 2
      %s34 = sadd.s32 1, %s29
      %p35 = scmp.ge.s32.totalorder %s34, 1
      %s36 = scalar_select %p35, 0, %s34
      %s37 = sadd.s32 1, %s28
      %s38 = scalar_select %p35, %s37, %s28
      %p39 = scmp.ge.s32.totalorder %s38, 2
      %s40 = scalar_select %p39, 0, %s38
      %s41 = ssub.s32 %s28, %s40
      %s42 = ssub.s32 %s29, %s36
      %s43 = sor.u32 %s41, %s42
      %p44 = scmp.eq.s32.totalorder %s43, 0
      %s46 = sadd.s32 %s45, 1
      %s47 = scalar_select %p44, %s45, %s46
      %p50 = pneg %p44
      %p51 = scmp.eq.s32.totalorder %s21, 1
      %p52 = por %p50, %p51
      %p53 = scmp.ne.s32.totalorder %s45, %s48
      %p54 = scmp.eq.s32.totalorder %s21, 0
      %p55 = por %p53, %p54
      %p56 = scmp.ne.s32.totalorder %s45, %s48
      %p57 = scmp.eq.s32.totalorder %s26, 1
      %p58 = por %p56, %p57
      %p59 = scmp.ne.s32.totalorder %s48, %s49
      %p60 = scmp.eq.s32.totalorder %s26, 0
      %p61 = por %p59, %p60
      %p62 = scmp.ne.s32.totalorder %s48, %s49
      %p63 = scmp.eq.s32.totalorder %s27, 1
      %p64 = por %p62, %p63
      %p66 = scmp.ne.s32.totalorder %s49, %s65
      %p67 = scmp.eq.s32.totalorder %s27, 0
      %p68 = por %p66, %p67
      %s69 = ssub.s32 %s28, %s40
      %p70 = scmp.eq.s32.totalorder %s69, 0
      %s72 = sadd.s32 %s71, 1
      %s73 = scalar_select %p70, %s71, %s72
      %p76 = pneg %p70
      %p77 = scmp.eq.s32.totalorder %s21, 1
      %p78 = por %p76, %p77
      %p79 = scmp.ne.s32.totalorder %s71, %s74
      %p80 = scmp.eq.s32.totalorder %s21, 0
      %p81 = por %p79, %p80
      %p82 = scmp.ne.s32.totalorder %s71, %s74
      %p83 = scmp.eq.s32.totalorder %s26, 1
      %p84 = por %p82, %p83
      %p85 = scmp.ne.s32.totalorder %s74, %s75
      %p86 = scmp.eq.s32.totalorder %s26, 0
      %p87 = por %p85, %p86
      %p88 = scmp.ne.s32.totalorder %s74, %s75
      %p89 = scmp.eq.s32.totalorder %s27, 1
      %p90 = por %p88, %p89
      %p92 = scmp.ne.s32.totalorder %s75, %s91
      %p93 = scmp.eq.s32.totalorder %s27, 0
      %p94 = por %p92, %p93
      %s95 = ssub.s32 %s28, %s40
      %p96 = scmp.eq.s32.totalorder %s95, 0
      %s98 = sadd.s32 %s97, 1
      %s99 = scalar_select %p96, %s97, %s98
      %p102 = pneg %p96
      %p103 = scmp.eq.s32.totalorder %s21, 1
      %p104 = por %p102, %p103
      %p105 = scmp.ne.s32.totalorder %s97, %s100
      %p106 = scmp.eq.s32.totalorder %s21, 0
      %p107 = por %p105, %p106
      %p108 = scmp.ne.s32.totalorder %s97, %s100
      %p109 = scmp.eq.s32.totalorder %s26, 1
      %p110 = por %p108, %p109
      %p111 = scmp.ne.s32.totalorder %s100, %s101
      %p112 = scmp.eq.s32.totalorder %s26, 0
      %p113 = por %p111, %p112
      %p114 = scmp.ne.s32.totalorder %s100, %s101
      %p115 = scmp.eq.s32.totalorder %s27, 1
      %p116 = por %p114, %p115
      %p118 = scmp.ne.s32.totalorder %s101, %s117
      %p119 = scmp.eq.s32.totalorder %s27, 0
      %p120 = por %p118, %p119
      %s121 = ssub.s32 %s28, %s40
      %p122 = scmp.eq.s32.totalorder %s121, 0
      %s124 = sadd.s32 %s123, 1
      %s125 = scalar_select %p122, %s123, %s124
      %p128 = pneg %p122
      %p129 = scmp.eq.s32.totalorder %s21, 1
      %p130 = por %p128, %p129
      %p131 = scmp.ne.s32.totalorder %s123, %s126
      %p132 = scmp.eq.s32.totalorder %s21, 0
      %p133 = por %p131, %p132
      %p134 = scmp.ne.s32.totalorder %s123, %s126
      %p135 = scmp.eq.s32.totalorder %s26, 1
      %p136 = por %p134, %p135
      %p137 = scmp.ne.s32.totalorder %s126, %s127
      %p138 = scmp.eq.s32.totalorder %s26, 0
      %p139 = por %p137, %p138
      %p140 = scmp.ne.s32.totalorder %s126, %s127
      %p141 = scmp.eq.s32.totalorder %s27, 1
      %p142 = por %p140, %p141
      %p144 = scmp.ne.s32.totalorder %s127, %s143
      %p145 = scmp.eq.s32.totalorder %s27, 0
      %p146 = por %p144, %p145
      %s148 = sadd.s32 %s147, 1
      %p151 = scmp.eq.s32.totalorder %s21, 1
      %p152 = scmp.ne.s32.totalorder %s147, %s149
      %p153 = scmp.eq.s32.totalorder %s21, 0
      %p154 = por %p152, %p153
      %p155 = scmp.ne.s32.totalorder %s147, %s149
      %p156 = scmp.eq.s32.totalorder %s26, 1
      %p157 = por %p155, %p156
      %p158 = scmp.ne.s32.totalorder %s149, %s150
      %p159 = scmp.eq.s32.totalorder %s26, 0
      %p160 = por %p158, %p159
      %p161 = scmp.ne.s32.totalorder %s149, %s150
      %p162 = scmp.eq.s32.totalorder %s27, 1
      %p163 = por %p161, %p162
      %p165 = scmp.ne.s32.totalorder %s150, %s164
      %p166 = scmp.eq.s32.totalorder %s27, 0
      %p167 = por %p165, %p166
      %s169 = sadd.s32 %s168, 1
      %p172 = scmp.eq.s32.totalorder %s21, 1
      %p173 = scmp.ne.s32.totalorder %s168, %s170
      %p174 = scmp.eq.s32.totalorder %s21, 0
      %p175 = por %p173, %p174
      %p176 = scmp.ne.s32.totalorder %s168, %s170
      %p177 = scmp.eq.s32.totalorder %s26, 1
      %p178 = por %p176, %p177
      %p179 = scmp.ne.s32.totalorder %s170, %s171
      %p180 = scmp.eq.s32.totalorder %s26, 0
      %p181 = por %p179, %p180
      %p182 = scmp.ne.s32.totalorder %s170, %s171
      %p183 = scmp.eq.s32.totalorder %s27, 1
      %p184 = por %p182, %p183
      %p186 = scmp.ne.s32.totalorder %s171, %s185
      %p187 = scmp.eq.s32.totalorder %s27, 0
      %p188 = por %p186, %p187
      %s190 = sadd.s32 %s189, 1
      %p193 = scmp.eq.s32.totalorder %s21, 1
      %p194 = scmp.ne.s32.totalorder %s189, %s191
      %p195 = scmp.eq.s32.totalorder %s21, 0
      %p196 = por %p194, %p195
      %p197 = scmp.ne.s32.totalorder %s189, %s191
      %p198 = scmp.eq.s32.totalorder %s26, 1
      %p199 = por %p197, %p198
      %p200 = scmp.ne.s32.totalorder %s191, %s192
      %p201 = scmp.eq.s32.totalorder %s26, 0
      %p202 = por %p200, %p201
      %p203 = scmp.ne.s32.totalorder %s191, %s192
      %p204 = scmp.eq.s32.totalorder %s27, 1
      %p205 = por %p203, %p204
      %p207 = scmp.ne.s32.totalorder %s192, %s206
      %p208 = scmp.eq.s32.totalorder %s27, 0
      %p209 = por %p207, %p208
      %s211 = sadd.s32 %s210, 1
      %p214 = scmp.eq.s32.totalorder %s21, 1
      %p215 = scmp.ne.s32.totalorder %s210, %s212
      %p216 = scmp.eq.s32.totalorder %s21, 0
      %p217 = por %p215, %p216
      %p218 = scmp.ne.s32.totalorder %s210, %s212
      %p219 = scmp.eq.s32.totalorder %s26, 1
      %p220 = por %p218, %p219
      %p221 = scmp.ne.s32.totalorder %s212, %s213
      %p222 = scmp.eq.s32.totalorder %s26, 0
      %p223 = por %p221, %p222
      %p224 = scmp.ne.s32.totalorder %s212, %s213
      %p225 = scmp.eq.s32.totalorder %s27, 1
      %p226 = por %p224, %p225
      %p228 = scmp.ne.s32.totalorder %s213, %s227
      %p229 = scmp.eq.s32.totalorder %s27, 0
      %p230 = por %p228, %p229
      %s232 = sadd.s32 %s231, 1
      %p235 = scmp.eq.s32.totalorder %s21, 1
      %p236 = scmp.ne.s32.totalorder %s231, %s233
      %p237 = scmp.eq.s32.totalorder %s21, 0
      %p238 = por %p236, %p237
      %p239 = scmp.ne.s32.totalorder %s231, %s233
      %p240 = scmp.eq.s32.totalorder %s26, 1
      %p241 = por %p239, %p240
      %p242 = scmp.ne.s32.totalorder %s233, %s234
      %p243 = scmp.eq.s32.totalorder %s26, 0
      %p244 = por %p242, %p243
      %p245 = scmp.ne.s32.totalorder %s233, %s234
      %p246 = scmp.eq.s32.totalorder %s27, 1
      %p247 = por %p245, %p246
      %p249 = scmp.ne.s32.totalorder %s234, %s248
      %p250 = scmp.eq.s32.totalorder %s27, 0
      %p251 = por %p249, %p250
      %s253 = sadd.s32 %s252, 1
      %p256 = scmp.eq.s32.totalorder %s21, 1
      %p257 = scmp.ne.s32.totalorder %s252, %s254
      %p258 = scmp.eq.s32.totalorder %s21, 0
      %p259 = por %p257, %p258
      %p260 = scmp.ne.s32.totalorder %s252, %s254
      %p261 = scmp.eq.s32.totalorder %s26, 1
      %p262 = por %p260, %p261
      %p263 = scmp.ne.s32.totalorder %s254, %s255
      %p264 = scmp.eq.s32.totalorder %s26, 0
      %p265 = por %p263, %p264
      %p266 = scmp.ne.s32.totalorder %s254, %s255
      %p267 = scmp.eq.s32.totalorder %s27, 1
      %p268 = por %p266, %p267
      %p270 = scmp.ne.s32.totalorder %s255, %s269
      %p271 = scmp.eq.s32.totalorder %s27, 0
      %p272 = por %p270, %p271
      %s273 = ssub.s32 %s28, %s40
      %s274 = ssub.s32 %s29, %s36
      %s275 = sor.u32 %s273, %s274
      %p276 = scmp.eq.s32.totalorder %s275, 0
      %s278 = sadd.s32 %s277, 1
      %s279 = scalar_select %p276, %s277, %s278
      %p282 = pneg %p276
      %p283 = scmp.eq.s32.totalorder %s21, 1
      %p284 = por %p282, %p283
      %p285 = scmp.ne.s32.totalorder %s277, %s280
      %p286 = scmp.eq.s32.totalorder %s21, 0
      %p287 = por %p285, %p286
      %p288 = scmp.ne.s32.totalorder %s277, %s280
      %p289 = scmp.eq.s32.totalorder %s26, 1
      %p290 = por %p288, %p289
      %p291 = scmp.ne.s32.totalorder %s280, %s281
      %p292 = scmp.eq.s32.totalorder %s26, 0
      %p293 = por %p291, %p292
      %p294 = scmp.ne.s32.totalorder %s280, %s281
      %p295 = scmp.eq.s32.totalorder %s27, 1
      %p296 = por %p294, %p295
      %p298 = scmp.ne.s32.totalorder %s281, %s297
      %p299 = scmp.eq.s32.totalorder %s27, 0
      %p300 = por %p298, %p299
      %p301 = scmp.le.s32.totalorder 1, %s21
      %p302 = scmp.lt.s32.totalorder %s21, 3
      %p303 = pnand %p301, %p302
      %p304 = pneg %p303
      // Predicated region
      $region9: #{tpu_custom_call.1} parent=5 // pred_check
        _
      $region10: #{tpu_custom_call.1} parent=5 // pred_check_branch
        %306 = sbr.rel (%p303) target = $region12
      $region11: #{tpu_custom_call.1} parent=5 // pred_region
        %s307 = ssub.s32 %s21, 1
        // Predicated region
        $region13: #{tpu_custom_call.1} parent=11 // pred_check
          %p308 = pneg %p160
        $region14: #{tpu_custom_call.1} parent=11 // pred_check_branch
          %310 = sbr.rel (%p308) target = $region16
        $region15: #{tpu_custom_call.1} parent=11 // pred_region
          _
        $region16: #{tpu_custom_call.1} parent=11 // pred_fallthru
          _
        // Predicated region
        $region17: #{tpu_custom_call.1} parent=11 // pred_check
          %p311 = pneg %p181
        $region18: #{tpu_custom_call.1} parent=11 // pred_check_branch
          %313 = sbr.rel (%p311) target = $region20
        $region19: #{tpu_custom_call.1} parent=11 // pred_region
          _
        $region20: #{tpu_custom_call.1} parent=11 // pred_fallthru
          _
        // Predicated region
        $region21: #{tpu_custom_call.1} parent=11 // pred_check
          %p314 = pneg %p202
        $region22: #{tpu_custom_call.1} parent=11 // pred_check_branch
          %316 = sbr.rel (%p314) target = $region24
        $region23: #{tpu_custom_call.1} parent=11 // pred_region
          _
        $region24: #{tpu_custom_call.1} parent=11 // pred_fallthru
          _
        // Predicated region
        $region25: #{tpu_custom_call.1} parent=11 // pred_check
          %p317 = pneg %p223
        $region26: #{tpu_custom_call.1} parent=11 // pred_check_branch
          %319 = sbr.rel (%p317) target = $region28
        $region27: #{tpu_custom_call.1} parent=11 // pred_region
          _
        $region28: #{tpu_custom_call.1} parent=11 // pred_fallthru
          _
        // Predicated region
        $region29: #{tpu_custom_call.1} parent=11 // pred_check
          %p320 = pneg %p244
        $region30: #{tpu_custom_call.1} parent=11 // pred_check_branch
          %322 = sbr.rel (%p320) target = $region32
        $region31: #{tpu_custom_call.1} parent=11 // pred_region
          _
        $region32: #{tpu_custom_call.1} parent=11 // pred_fallthru
          _
        // Predicated region
        $region33: #{tpu_custom_call.1} parent=11 // pred_check
          %p323 = pneg %p265
        $region34: #{tpu_custom_call.1} parent=11 // pred_check_branch
          %325 = sbr.rel (%p323) target = $region36
        $region35: #{tpu_custom_call.1} parent=11 // pred_region
          _
        $region36: #{tpu_custom_call.1} parent=11 // pred_fallthru
          _
      $region12: #{tpu_custom_call.1} parent=5 // pred_fallthru
        _
      %p326 = scmp.lt.s32.totalorder %s21, 2
      // Predicated region
      $region37: #{tpu_custom_call.1} parent=5 // pred_check
        %p327 = pneg %p326
      $region38: #{tpu_custom_call.1} parent=5 // pred_check_branch
        %329 = sbr.rel (%p327) target = $region40
      $region39: #{tpu_custom_call.1} parent=5 // pred_region
        // Predicated region
        $region41: #{tpu_custom_call.1} parent=39 // pred_check
          %p330 = pneg %p55
        $region42: #{tpu_custom_call.1} parent=39 // pred_check_branch
          %332 = sbr.rel (%p330) target = $region44
        $region43: #{tpu_custom_call.1} parent=39 // pred_region
          %p333 = scmp.lt.s32.totalorder %s28, 1
          %s334 = scalar_select %p333, %s28, 1
          %p335 = scmp.lt.s32.totalorder %s29, 0
          %s336 = scalar_select %p335, %s29, 0
          %s337 = sadd.s32 %s336, %s334
          %s338 = smul.addr %s337, 4
          %s339 = scalar_lea.vmem %s0, %s338
        $region44: #{tpu_custom_call.1} parent=39 // pred_fallthru
          _
        // Predicated region
        $region45: #{tpu_custom_call.1} parent=39 // pred_check
          %p340 = pneg %p81
        $region46: #{tpu_custom_call.1} parent=39 // pred_check_branch
          %342 = sbr.rel (%p340) target = $region48
        $region47: #{tpu_custom_call.1} parent=39 // pred_region
          %p343 = scmp.lt.s32.totalorder %s28, 1
          %s344 = scalar_select %p343, %s28, 1
          %s345 = smul.addr %s344, 4
          %s346 = scalar_lea.vmem %s1, %s345
        $region48: #{tpu_custom_call.1} parent=39 // pred_fallthru
          _
        // Predicated region
        $region49: #{tpu_custom_call.1} parent=39 // pred_check
          %p347 = pneg %p107
        $region50: #{tpu_custom_call.1} parent=39 // pred_check_branch
          %349 = sbr.rel (%p347) target = $region52
        $region51: #{tpu_custom_call.1} parent=39 // pred_region
          %p350 = scmp.lt.s32.totalorder %s28, 1
          %s351 = scalar_select %p350, %s28, 1
          %s352 = smul.addr %s351, 4
          %s353 = scalar_lea.vmem %s2, %s352
        $region52: #{tpu_custom_call.1} parent=39 // pred_fallthru
          _
        // Predicated region
        $region53: #{tpu_custom_call.1} parent=39 // pred_check
          %p354 = pneg %p133
        $region54: #{tpu_custom_call.1} parent=39 // pred_check_branch
          %356 = sbr.rel (%p354) target = $region56
        $region55: #{tpu_custom_call.1} parent=39 // pred_region
          %p357 = scmp.lt.s32.totalorder %s28, 1
          %s358 = scalar_select %p357, %s28, 1
          %s359 = smul.addr %s358, 4
          %s360 = smul.addr %s359, 8
          %s361 = scalar_lea.vmem %s3, %s360
        $region56: #{tpu_custom_call.1} parent=39 // pred_fallthru
          _
      $region40: #{tpu_custom_call.1} parent=5 // pred_fallthru
        _
      %p362 = scmp.le.s32.totalorder 1, %s21
      %p363 = scmp.lt.s32.totalorder %s21, 3
      %p364 = pnand %p362, %p363
      %p365 = pneg %p364
      // Predicated region
      $region57: #{tpu_custom_call.1} parent=5 // pred_check
        _
      $region58: #{tpu_custom_call.1} parent=5 // pred_check_branch
        %367 = sbr.rel (%p364) target = $region60
      $region59: #{tpu_custom_call.1} parent=5 // pred_region
        %s368 = ssub.s32 %s21, 1
        %p369 = scmp.lt.s32.totalorder %s30, 1
        %s370 = scalar_select %p369, %s30, 1
        %p371 = scmp.lt.s32.totalorder %s31, 0
        %s372 = scalar_select %p371, %s31, 0
        %s373 = sadd.s32 %s372, %s370
        %s374 = smul.addr %s373, 4
        %s375 = scalar_lea.vmem %s0, %s374
        %p376 = pneg %p61
        %p377 = pneg %p58
        %p378 = scmp.lt.s32.totalorder %s30, 1
        %s379 = scalar_select %p378, %s30, 1
        %s380 = smul.addr %s379, 4
        %s381 = scalar_lea.vmem %s1, %s380
        %p382 = pneg %p87
        %p383 = pneg %p84
        %p384 = scmp.lt.s32.totalorder %s30, 1
        %s385 = scalar_select %p384, %s30, 1
        %s386 = smul.addr %s385, 4
        %s387 = scalar_lea.vmem %s2, %s386
        %p388 = pneg %p113
        %p389 = pneg %p110
        %p390 = scmp.lt.s32.totalorder %s30, 1
        %s391 = scalar_select %p390, %s30, 1
        %s392 = smul.addr %s391, 4
        %s393 = smul.addr %s392, 8
        %s394 = scalar_lea.vmem %s3, %s393
        %p395 = pneg %p139
        %p396 = pneg %p136
        %p397 = pneg %p160
        %p398 = pneg %p157
        %p399 = pneg %p181
        %p400 = pneg %p178
        %p401 = pneg %p202
        %p402 = pneg %p199
        %p403 = pneg %p223
        %p404 = pneg %p220
        %p405 = pneg %p244
        %p406 = pneg %p241
        %p407 = pneg %p265
        %p408 = pneg %p262
        %p409 = pneg %p293
        %p410 = pneg %p290
        %s411 = sand.u32 %s280, 1
        %s412 = scalar_lea.sflag [#allocation4], %s411
        %s413 = sand.u32 %s280, 1
        %s414 = scalar_lea.vmem [#allocation3], %s413
        %p415 = scmp.lt.s32.totalorder %s30, 1
        %s416 = scalar_select %p415, %s30, 1
        %p417 = scmp.lt.s32.totalorder %s31, 0
        %s418 = scalar_select %p417, %s31, 0
        %s419 = sadd.s32 %s418, %s416
        %s420 = smul.addr %s419, 4
        %s421 = scalar_lea.vmem %s0, %s420
        %p422 = scmp.lt.s32.totalorder %s30, 1
        %s423 = scalar_select %p422, %s30, 1
        %s424 = smul.addr %s423, 4
        %s425 = scalar_lea.vmem %s1, %s424
        %p426 = scmp.lt.s32.totalorder %s30, 1
        %s427 = scalar_select %p426, %s30, 1
        %s428 = smul.addr %s427, 4
        %s429 = scalar_lea.vmem %s2, %s428
        %p430 = scmp.lt.s32.totalorder %s30, 1
        %s431 = scalar_select %p430, %s30, 1
        %s432 = smul.addr %s431, 4
        %s433 = smul.addr %s432, 8
        %s434 = scalar_lea.vmem %s3, %s433
        %v436 = vld [vmem:[%s421] sm:$0x7]
        %v437 = vld [vmem:[%s425] sm:$0xf]
        %v438 = vld [vmem:[%s429] sm:$0xf]
        %v439 = vld [vmem:[%s434] sm:$0xff]
        %v440 = vld [vmem:[%s434 + $0x8] sm:$0xff]
        %v441 = vld [vmem:[%s434 + $0x10] sm:$0xff]
        %v442 = vld [vmem:[%s434 + $0x18] sm:$0xff]
        %v443 = vmul.f32 %v436, %v436
        %v445 = vrot.slane %v443, 1
        %v447 = vadd.f32 %v443, %v445
        %v448 = vrot.slane %v443, 2
        %v450 = vadd.f32 %v447, %v448
        %v451 = vadd.f32 %v450, 1e-10
        %v452 = vrsqrt.pop %v451
        %454 = vset.pattern.permute.xlu0 0
        %455 = vperm.xlu0 %454, %v437
        %v456 = vpop.permute.xlu0 %455
        %v458 = vlaneseq
        %v459 = vshrl.u32 %v458, 7
        %v460 = vsub.s32 0, %v459
        %v461 = vrot.slane %v436, %v460
        %v462 = vmul.f32 %v456, %v461
        %463 = vset.pattern.permute.xlu0 1
        %464 = vperm.xlu0 %463, %v437
        %v465 = vpop.permute.xlu0 %464
        %v467 = vlaneseq
        %v468 = vshrl.u32 %v467, 7
        %v469 = vsub.s32 1, %v468
        %v470 = vrot.slane %v436, %v469
        %v471 = vmul.f32 %v465, %v470
        %v472 = vadd.f32 %v462, %v471
        %473 = vset.pattern.permute.xlu0 2
        %474 = vperm.xlu0 %473, %v437
        %v475 = vpop.permute.xlu0 %474
        %v477 = vlaneseq
        %v478 = vshrl.u32 %v477, 7
        %v479 = vsub.s32 2, %v478
        %v480 = vrot.slane %v436, %v479
        %v481 = vmul.f32 %v475, %v480
        %v482 = vadd.f32 %v472, %v481
        %v483 = vlaneseq
        %v484 = vshrl.u32 %v483, 7
        %v485 = vsub.s32 0, %v484
        %v486 = vrot.slane %v452, %v485
        %v487 = vmul.f32 %v482, %v486
        %489 = vset.pattern.permute.xlu0 0
        %490 = vperm.xlu0 %489, %v438
        %v491 = vpop.permute.xlu0 %490
        %v493 = vsub.f32 %v461, %v491
        %494 = vset.pattern.permute.xlu0 1
        %495 = vperm.xlu0 %494, %v438
        %v496 = vpop.permute.xlu0 %495
        %v498 = vsub.f32 %v470, %v496
        %499 = vset.pattern.permute.xlu0 2
        %500 = vperm.xlu0 %499, %v438
        %v501 = vpop.permute.xlu0 %500
        %v503 = vsub.f32 %v480, %v501
        %v504 = vmul.f32 %v493, %v493
        %v505 = vmul.f32 %v498, %v498
        %v506 = vadd.f32 %v504, %v505
        %v507 = vmul.f32 %v503, %v503
        %v508 = vadd.f32 %v506, %v507
        %v509 = vrsqrt.pop %v508
        %v510 = vmul.f32 %v508, %v509
        %vm511 = vcmp.eq.f32.partialorder %v508, inf
        %v512 = vsel %vm511, %v508, %v510
        %vm513 = vcmp.eq.f32.partialorder %v508, 0.0
        %v514 = vand.u32 %v508, 2147483648
        %v515 = vsel %vm513, %v514, %v512
        %v516 = vld [vmem:[%s4] sm:$0xf]
        %v517 = vld [vmem:[%s4 + $0x4] sm:$0xf]
        %v518 = vld [vmem:[%s4 + $0x8] sm:$0xf]
        %v519 = vld [vmem:[%s4 + $0xc] sm:$0xf]
        %v520 = vpack.c.bf16 %v487, %v487
        %v521 = vld [vmem:[%s5] sm:$0xf]
        %v522 = vld [vmem:[%s5 + $0x4] sm:$0xf]
        %v523 = vld [vmem:[%s5 + $0x8] sm:$0xf]
        %v524 = vld [vmem:[%s5 + $0xc] sm:$0xf]
        %v525 = vpack.c.bf16 %v515, %v515
        %v530 = vunpack.c.l.b16 %v521
        %v531 = vunpack.c.l.b16 %v522
        %v532 = vunpack.c.l.b16 %v523
        %v533 = vunpack.c.l.b16 %v524
        %v534 = vpack.c.b16 %v531, %v530
        %v535 = vpack.c.b16 %v533, %v532
        %vm536 = vcmask 31744
        %v538 = vsel %vm536, %v534, 0
        %v541 = vsel %vm536, %v535, 0
        %vm543 = vcmask 1041408
        %v545 = vsel %vm543, %v525, 0
        %547 = vmatprep.subr.bf16.mxu0 0
        %548 = vmatpush1.bf16.msra.mxu0 %v545
        %549 = vmatprep.subr.bf16.mxu0 0
        %550 = vmatpush1.bf16.msra.mxu0 0
        %551 = vmatprep.subr.bf16.mxu0 0
        %552 = vmatpush1.bf16.msra.mxu0 0
        %553 = vmatprep.subr.bf16.mxu0 0
        %554 = vmatpush1.bf16.msra.mxu0 0
        %555 = vmatprep.subr.bf16.mxu0 0
        %556 = vmatpush1.bf16.msra.mxu0 0
        %557 = vmatprep.subr.bf16.mxu0 0
        %558 = vmatpush1.bf16.msra.mxu0 0
        %559 = vmatprep.subr.bf16.mxu0 0
        %560 = vmatpush1.bf16.msra.mxu0 0
        %561 = vmatprep.subr.bf16.mxu0 0
        %562 = vmatpush1.bf16.msra.mxu0 0
        %563 = vmatprep.subr.bf16.mxu0 0
        %564 = vmatpush1.bf16.msra.mxu0 0
        %565 = vmatprep.subr.bf16.mxu0 0
        %566 = vmatpush1.bf16.msra.mxu0 0
        %567 = vmatprep.subr.bf16.mxu0 0
        %568 = vmatpush1.bf16.msra.mxu0 0
        %569 = vmatprep.subr.bf16.mxu0 0
        %570 = vmatpush1.bf16.msra.mxu0 0
        %571 = vmatprep.subr.bf16.mxu0 0
        %572 = vmatpush1.bf16.msra.mxu0 0
        %573 = vmatprep.subr.bf16.mxu0 0
        %574 = vmatpush1.bf16.msra.mxu0 0
        %575 = vmatprep.subr.bf16.mxu0 0
        %576 = vmatpush1.bf16.msra.mxu0 0
        %577 = vmatprep.subr.bf16.mxu0 0
        %578 = vmatpush1.bf16.msra.mxu0 0
        %579 = vmatprep.mubr.bf16.mxu0 0
        %580 = vmatmul.mubr.bf16.gmra.mrb[0].mxu0 %v538
        %v581 = vpop.f32.mrb[0].mxu0
        %v582 = vadd.f32 0.0, %v581
        %v583 = vpop.f32.mrb[0].mxu0
        %v584 = vpop.f32.mrb[0].mxu0
        %v585 = vadd.f32 0.0, %v584
        %v586 = vpop.f32.mrb[0].mxu0
        %587 = vmatprep.mubr.bf16.mxu0 0
        %588 = vmatmul.mubr.bf16.gmra.mrb[0].mxu0 %v541
        %v589 = vpop.f32.mrb[0].mxu0
        %v590 = vadd.f32 0.0, %v589
        %v591 = vpop.f32.mrb[0].mxu0
        %v592 = vpop.f32.mrb[0].mxu0
        %v593 = vadd.f32 0.0, %v592
        %v594 = vpop.f32.mrb[0].mxu0
        %595 = vdwg.mxu0
        %v600 = vunpack.c.l.b16 %v516
        %v601 = vunpack.c.l.b16 %v517
        %v602 = vunpack.c.l.b16 %v518
        %v603 = vunpack.c.l.b16 %v519
        %v604 = vpack.c.b16 %v601, %v600
        %v605 = vpack.c.b16 %v603, %v602
        %v607 = vsel %vm536, %v604, 0
        %v610 = vsel %vm536, %v605, 0
        %v613 = vsel %vm543, %v520, 0
        %615 = vmatprep.subr.bf16.mxu0 0
        %616 = vmatpush1.bf16.msra.mxu0 %v613
        %617 = vmatprep.subr.bf16.mxu0 0
        %618 = vmatpush1.bf16.msra.mxu0 0
        %619 = vmatprep.subr.bf16.mxu0 0
        %620 = vmatpush1.bf16.msra.mxu0 0
        %621 = vmatprep.subr.bf16.mxu0 0
        %622 = vmatpush1.bf16.msra.mxu0 0
        %623 = vmatprep.subr.bf16.mxu0 0
        %624 = vmatpush1.bf16.msra.mxu0 0
        %625 = vmatprep.subr.bf16.mxu0 0
        %626 = vmatpush1.bf16.msra.mxu0 0
        %627 = vmatprep.subr.bf16.mxu0 0
        %628 = vmatpush1.bf16.msra.mxu0 0
        %629 = vmatprep.subr.bf16.mxu0 0
        %630 = vmatpush1.bf16.msra.mxu0 0
        %631 = vmatprep.subr.bf16.mxu0 0
        %632 = vmatpush1.bf16.msra.mxu0 0
        %633 = vmatprep.subr.bf16.mxu0 0
        %634 = vmatpush1.bf16.msra.mxu0 0
        %635 = vmatprep.subr.bf16.mxu0 0
        %636 = vmatpush1.bf16.msra.mxu0 0
        %637 = vmatprep.subr.bf16.mxu0 0
        %638 = vmatpush1.bf16.msra.mxu0 0
        %639 = vmatprep.subr.bf16.mxu0 0
        %640 = vmatpush1.bf16.msra.mxu0 0
        %641 = vmatprep.subr.bf16.mxu0 0
        %642 = vmatpush1.bf16.msra.mxu0 0
        %643 = vmatprep.subr.bf16.mxu0 0
        %644 = vmatpush1.bf16.msra.mxu0 0
        %645 = vmatprep.subr.bf16.mxu0 0
        %646 = vmatpush1.bf16.msra.mxu0 0
        %647 = vmatprep.mubr.bf16.mxu0 0
        %648 = vmatmul.mubr.bf16.gmra.mrb[0].mxu0 %v607
        %v649 = vpop.f32.mrb[0].mxu0
        %v650 = vadd.f32 %v582, %v649
        %v651 = vpop.f32.mrb[0].mxu0
        %v652 = vpop.f32.mrb[0].mxu0
        %v653 = vadd.f32 %v585, %v652
        %v654 = vpop.f32.mrb[0].mxu0
        %655 = vmatprep.mubr.bf16.mxu0 0
        %656 = vmatmul.mubr.bf16.gmra.mrb[0].mxu0 %v610
        %v657 = vpop.f32.mrb[0].mxu0
        %v658 = vadd.f32 %v590, %v657
        %v659 = vpop.f32.mrb[0].mxu0
        %v660 = vpop.f32.mrb[0].mxu0
        %v661 = vadd.f32 %v593, %v660
        %v662 = vpop.f32.mrb[0].mxu0
        %663 = vdwg.mxu0
        %665 = vset.pattern.permute.xlu0 0
        %666 = vperm.xlu0 %665, %v439
        %v667 = vpop.permute.xlu0 %666
        %670 = vset.pattern.permute.xlu0 0
        %671 = vperm.xlu0 %670, %v440
        %v672 = vpop.permute.xlu0 %671
        %675 = vset.pattern.permute.xlu0 0
        %676 = vperm.xlu0 %675, %v441
        %v677 = vpop.permute.xlu0 %676
        %680 = vset.pattern.permute.xlu0 0
        %681 = vperm.xlu0 %680, %v442
        %v682 = vpop.permute.xlu0 %681
        %v684 = vadd.f32 %v650, %v667
        %v685 = vadd.f32 %v653, %v672
        %v686 = vadd.f32 %v658, %v677
        %v687 = vadd.f32 %v661, %v682
        %v688 = vmul.f32 %v684, 0.01
        %v689 = vmul.f32 %v685, 0.01
        %v690 = vmul.f32 %v686, 0.01
        %v691 = vmul.f32 %v687, 0.01
        %v692 = vmax.f32 %v684, %v688
        %v693 = vmax.f32 %v685, %v689
        %v694 = vmax.f32 %v686, %v690
        %v695 = vmax.f32 %v687, %v691
        %v696 = vpack.c.bf16 %v693, %v692
        %v697 = vpack.c.bf16 %v695, %v694
        %v698 = vld [vmem:[%s6] sm:$0xf]
        %v699 = vld [vmem:[%s6 + $0x4] sm:$0xf]
        %v700 = vld [vmem:[%s6 + $0x8] sm:$0xf]
        %v701 = vld [vmem:[%s6 + $0xc] sm:$0xf]
        %v702 = vld [vmem:[%s7] sm:$0xff]
        %v703 = vld [vmem:[%s7 + $0x8] sm:$0xff]
        %v704 = vld [vmem:[%s7 + $0x10] sm:$0xff]
        %v705 = vld [vmem:[%s7 + $0x18] sm:$0xff]
        %707 = vset.pattern.permute.xlu0 0
        %708 = vperm.xlu0 %707, %v702
        %v709 = vpop.permute.xlu0 %708
        %712 = vset.pattern.permute.xlu0 0
        %713 = vperm.xlu0 %712, %v703
        %v714 = vpop.permute.xlu0 %713
        %717 = vset.pattern.permute.xlu0 0
        %718 = vperm.xlu0 %717, %v704
        %v719 = vpop.permute.xlu0 %718
        %722 = vset.pattern.permute.xlu0 0
        %723 = vperm.xlu0 %722, %v705
        %v724 = vpop.permute.xlu0 %723
        %v730 = vunpack.c.l.b16 %v698
        %v731 = vunpack.c.l.b16 %v699
        %v732 = vunpack.c.l.b16 %v700
        %v733 = vunpack.c.l.b16 %v701
        %v734 = vpack.c.b16 %v731, %v730
        %v735 = vpack.c.b16 %v733, %v732
        %vm736 = vcmask 261120
        %v738 = vsel %vm736, %v734, 0
        %v741 = vsel %vm736, %v735, 0
        %743 = vmatprep.subr.bf16.mxu0 0
        %744 = vmatpush1.bf16.msra.mxu0 %v696
        %745 = vmatprep.subr.bf16.mxu0 0
        %746 = vmatpush1.bf16.msra.mxu0 %v697
        %747 = vmatprep.subr.bf16.mxu0 0
        %748 = vmatpush1.bf16.msra.mxu0 0
        %749 = vmatprep.subr.bf16.mxu0 0
        %750 = vmatpush1.bf16.msra.mxu0 0
        %751 = vmatprep.subr.bf16.mxu0 0
        %752 = vmatpush1.bf16.msra.mxu0 0
        %753 = vmatprep.subr.bf16.mxu0 0
        %754 = vmatpush1.bf16.msra.mxu0 0
        %755 = vmatprep.subr.bf16.mxu0 0
        %756 = vmatpush1.bf16.msra.mxu0 0
        %757 = vmatprep.subr.bf16.mxu0 0
        %758 = vmatpush1.bf16.msra.mxu0 0
        %759 = vmatprep.subr.bf16.mxu0 0
        %760 = vmatpush1.bf16.msra.mxu0 0
        %761 = vmatprep.subr.bf16.mxu0 0
        %762 = vmatpush1.bf16.msra.mxu0 0
        %763 = vmatprep.subr.bf16.mxu0 0
        %764 = vmatpush1.bf16.msra.mxu0 0
        %765 = vmatprep.subr.bf16.mxu0 0
        %766 = vmatpush1.bf16.msra.mxu0 0
        %767 = vmatprep.subr.bf16.mxu0 0
        %768 = vmatpush1.bf16.msra.mxu0 0
        %769 = vmatprep.subr.bf16.mxu0 0
        %770 = vmatpush1.bf16.msra.mxu0 0
        %771 = vmatprep.subr.bf16.mxu0 0
        %772 = vmatpush1.bf16.msra.mxu0 0
        %773 = vmatprep.subr.bf16.mxu0 0
        %774 = vmatpush1.bf16.msra.mxu0 0
        %775 = vmatprep.mubr.bf16.mxu0 0
        %776 = vmatmul.mubr.bf16.gmra.mrb[0].mxu0 %v738
        %v777 = vpop.f32.mrb[0].mxu0
        %v778 = vadd.f32 %v709, %v777
        %v779 = vpop.f32.mrb[0].mxu0
        %v780 = vpop.f32.mrb[0].mxu0
        %v781 = vadd.f32 %v714, %v780
        %v782 = vpop.f32.mrb[0].mxu0
        %783 = vmatprep.mubr.bf16.mxu0 0
        %784 = vmatmul.mubr.bf16.gmra.mrb[0].mxu0 %v741
        %v785 = vpop.f32.mrb[0].mxu0
        %v786 = vadd.f32 %v719, %v785
        %v787 = vpop.f32.mrb[0].mxu0
        %v788 = vpop.f32.mrb[0].mxu0
        %v789 = vadd.f32 %v724, %v788
        %v790 = vpop.f32.mrb[0].mxu0
        %791 = vdwg.mxu0
        %v792 = vmul.f32 %v778, 0.01
        %v793 = vmul.f32 %v781, 0.01
        %v794 = vmul.f32 %v786, 0.01
        %v795 = vmul.f32 %v789, 0.01
        %v796 = vmax.f32 %v778, %v792
        %v797 = vmax.f32 %v781, %v793
        %v798 = vmax.f32 %v786, %v794
        %v799 = vmax.f32 %v789, %v795
        %v800 = vpack.c.bf16 %v797, %v796
        %v801 = vpack.c.bf16 %v799, %v798
        %v802 = vld [vmem:[%s8] sm:$0x1]
        %v803 = vld [vmem:[#allocation2] sm:$0x1]
        %805 = vset.pattern.permute.xlu0 0
        %806 = vperm.xlu0 %805, %v803
        %v807 = vpop.permute.xlu0 %806
        %v809 = vlaneseq
        %v810 = vshrl.u32 %v809, 7
        %v811 = vsub.s32 0, %v810
        %v812 = vrot.slane %v807, %v811
        %v814 = vsel %vm736, %v802, 0
        %816 = vmatprep.subr.bf16.mxu0 0
        %817 = vmatpush1.bf16.msra.mxu0 %v800
        %818 = vmatprep.subr.bf16.mxu0 0
        %819 = vmatpush1.bf16.msra.mxu0 %v801
        %820 = vmatprep.subr.bf16.mxu0 0
        %821 = vmatpush1.bf16.msra.mxu0 0
        %822 = vmatprep.subr.bf16.mxu0 0
        %823 = vmatpush1.bf16.msra.mxu0 0
        %824 = vmatprep.subr.bf16.mxu0 0
        %825 = vmatpush1.bf16.msra.mxu0 0
        %826 = vmatprep.subr.bf16.mxu0 0
        %827 = vmatpush1.bf16.msra.mxu0 0
        %828 = vmatprep.subr.bf16.mxu0 0
        %829 = vmatpush1.bf16.msra.mxu0 0
        %830 = vmatprep.subr.bf16.mxu0 0
        %831 = vmatpush1.bf16.msra.mxu0 0
        %832 = vmatprep.subr.bf16.mxu0 0
        %833 = vmatpush1.bf16.msra.mxu0 0
        %834 = vmatprep.subr.bf16.mxu0 0
        %835 = vmatpush1.bf16.msra.mxu0 0
        %836 = vmatprep.subr.bf16.mxu0 0
        %837 = vmatpush1.bf16.msra.mxu0 0
        %838 = vmatprep.subr.bf16.mxu0 0
        %839 = vmatpush1.bf16.msra.mxu0 0
        %840 = vmatprep.subr.bf16.mxu0 0
        %841 = vmatpush1.bf16.msra.mxu0 0
        %842 = vmatprep.subr.bf16.mxu0 0
        %843 = vmatpush1.bf16.msra.mxu0 0
        %844 = vmatprep.subr.bf16.mxu0 0
        %845 = vmatpush1.bf16.msra.mxu0 0
        %846 = vmatprep.subr.bf16.mxu0 0
        %847 = vmatpush1.bf16.msra.mxu0 0
        %848 = vmatprep.mubr.bf16.mxu0 0
        %849 = vmatmul.mubr.bf16.gmra.mrb[0].mxu0 %v814
        %v850 = vpop.f32.mrb[0].mxu0
        %v851 = vadd.f32 %v812, %v850
        %v852 = vpop.f32.mrb[0].mxu0
        %v853 = vpop.f32.mrb[0].mxu0
        %v854 = vpop.f32.mrb[0].mxu0
        %855 = vdwg.mxu0
        %856 = vst [vmem:[%s414] sm:$0x1] %v851
        %s857 = sand.u32 %s280, 1
        %s858 = scalar_lea.sflag [#allocation4], %s857
        %s859 = sand.u32 %s280, 1
        %s860 = scalar_lea.vmem [#allocation3], %s859
        // Predicated region
        $region61: #{tpu_custom_call.1} parent=59 // pred_check
          %p861 = pneg %p290
        $region62: #{tpu_custom_call.1} parent=59 // pred_check_branch
          %863 = sbr.rel (%p861) target = $region64
        $region63: #{tpu_custom_call.1} parent=59 // pred_region
          %s865 = ssub.s32 16, 16
          %866 = vsyncadd %s858, %s865
          %s867 = sadd.s32 %s31, %s30
          %s868 = smul.addr %s867, 16
          %s869 = scalar_lea.hbm %s10, %s868
          %s871 = sshll.u32 %s860, 4
          %s872 = int_to_ptr.vmem [resolvable:$true] %s871
          %874 = dma.vmem_to_hbm [thread:$0]  %s872, 16, %s869, %s858
        $region64: #{tpu_custom_call.1} parent=59 // pred_fallthru
          _
      $region60: #{tpu_custom_call.1} parent=5 // pred_fallthru
        _
      %p875 = scmp.le.s32.totalorder 2, %s21
      // Predicated region
      $region65: #{tpu_custom_call.1} parent=5 // pred_check
        %p876 = pneg %p875
      $region66: #{tpu_custom_call.1} parent=5 // pred_check_branch
        %878 = sbr.rel (%p876) target = $region68
      $region67: #{tpu_custom_call.1} parent=5 // pred_region
        %s879 = ssub.s32 %s21, 2
        // Predicated region
        $region69: #{tpu_custom_call.1} parent=67 // pred_check
          %p880 = pneg %p296
        $region70: #{tpu_custom_call.1} parent=67 // pred_check_branch
          %882 = sbr.rel (%p880) target = $region72
        $region71: #{tpu_custom_call.1} parent=67 // pred_region
          %s883 = sand.u32 %s281, 1
          %s884 = scalar_lea.sflag [#allocation4], %s883
          %s885 = sand.u32 %s281, 1
          %s886 = scalar_lea.vmem [#allocation3], %s885
          %887 = dma.done %s884, 16
        $region72: #{tpu_custom_call.1} parent=67 // pred_fallthru
          _
      $region68: #{tpu_custom_call.1} parent=5 // pred_fallthru
        _
    $region6: #{tpu_custom_call.1} parent=1 // loop_footer
      %s25 = sadd.s32 1, %s21
    $region7: #{tpu_custom_call.1} parent=1 // loop_footer_branch
      %20 = sbr.rel target = $region3
    $region8: #{tpu_custom_call.1} parent=1 // loop_exit
      _
    %888 = vsyncpa [#allocation4], 1
    %s889 = scalar_lea.sflag [#allocation4], 1
    %890 = vsyncpa %s889, 1

</llo_original>
